<compile_context>
chip_gen: v6e
topology: v6e:2x2x1
jax: 0.10.0
libtpu: 0.0.40
codegen_flags: <defaults>
</compile_context>

<pallas_src>
import math

import numpy as np
import jax
import jax.numpy as jnp
from jax import lax
from jax.experimental import pallas as pl
from jax.experimental.pallas import tpu as pltpu


# ---------------------------------------------------------------------------
# Host-side helpers
# ---------------------------------------------------------------------------

def _interp_matrix(in_size: int, out_size: int) -> np.ndarray:
    """align_corners=True 1-D linear interpolation matrix W[out, in] (numpy f32)."""
    W = np.zeros((out_size, in_size), dtype=np.float32)
    for i in range(out_size):
        src = 0.0 if out_size == 1 else i * (in_size - 1) / (out_size - 1)
        i0 = min(int(math.floor(src)), in_size - 1)
        i1 = min(i0 + 1, in_size - 1)
        w1 = src - i0
        W[i, i0] += 1.0 - w1
        W[i, i1] += w1
    return W


def _round_up(x: int, m: int) -> int:
    return ((x + m - 1) // m) * m


def _vmem_capacity_bytes() -> int:
    """Physical VMEM of the attached chip; conservative (v7x, 64 MiB) fallback."""
    try:
        cap = getattr(pltpu.get_tpu_info(), "vmem_capacity_bytes", None)
        if cap:
            return int(cap)
    except Exception:
        pass
    return 64 * 1024 * 1024


def _pick_bc_kron(nc: int, kin: int, kout: int, itemsize: int, budget: int) -> int:
    """Plane-batch for the Kronecker path, budgeted in *padded-layout* bytes."""
    sub = 8 * (4 // itemsize)                      # f32 -> 8 sublanes, bf16 -> 16
    kin_l = _round_up(kin, 128)
    kout_l = _round_up(kout, 128)
    w_bytes = 2 * _round_up(kin, 8) * kout_l * 4   # K weight, counted 2-buffered
    avail = max(budget - w_bytes, 1 << 20)
    per_row = (2 * kin_l * itemsize                # input block, double-buffered
               + 2 * kout_l * itemsize             # output block, double-buffered
               + kout_l * 4)                       # f32 matmul result
    bc_max = max(1, avail // per_row)
    if nc <= sub:
        return nc                                  # block == full dim (tiling rule ok)
    bc = min(nc, max(sub, (bc_max // sub) * sub))  # sublane-aligned
    # Keep >= 2 grid steps when there is enough work so the "parallel" axis can
    # be sharded across both v7x TensorCores.
    if bc >= nc and nc >= 2 * sub:
        bc = _round_up(pl.cdiv(nc, 2), sub)
    return bc


def _pick_bc_separable(nc: int, h: int, w: int, h_out: int, w_out: int,
                       itemsize: int, budget: int) -> int:
    """Plane-batch for the separable fallback, budgeted in padded-layout bytes."""
    w_l, wo_l = _round_up(w, 128), _round_up(w_out, 128)
    h_s, ho_s = _round_up(h, 8), _round_up(h_out, 8)
    w_bytes = 2 * (ho_s * _round_up(h, 128) + _round_up(w, 8) * wo_l) * 4
    avail = max(budget - w_bytes, 1 << 20)
    per_plane = (2 * h_s * w_l * itemsize          # input block, double-buffered
                 + 2 * ho_s * wo_l * itemsize      # output block, double-buffered
                 + h_s * wo_l * 4                  # width-pass intermediate (f32)
                 + ho_s * wo_l * 4)                # height-pass result (f32)
    bc = max(1, min(nc, avail // per_plane))
    if nc >= 2 and bc >= nc:
        bc = pl.cdiv(nc, 2)                        # >= 2 grid steps (v7x 2-TC)
    return int(bc)


# ---------------------------------------------------------------------------
# Kernels
# ---------------------------------------------------------------------------

def _kron_resize_kernel(x_ref, k_ref, o_ref):
    # x_ref: (BC, H*W)           lane-dense input planes
    # k_ref: (H*W, Hout*Wout)    kron(factor*Wh, Ww)^T, f32, VMEM-resident
    # o_ref: (BC, Hout*Wout)     lane-dense output planes
    o_ref[...] = jnp.dot(x_ref[...], k_ref[...],
                         preferred_element_type=jnp.float32).astype(o_ref.dtype)


def _separable_resize_kernel(x_ref, wh_ref, wwt_ref, o_ref):
    # x_ref:  (BC, H, W)      wh_ref: (Hout, H) factor folded   wwt_ref: (W, Wout)
    # o_ref:  (BC, Hout, Wout)
    # Per-plane rank-2 matmuls; Wh/WwT stay as a single VMEM copy (no broadcast).
    # In the fallback regime (large H/W) each per-plane matmul fills the MXU.
    def body(b, carry):
        t = jnp.dot(x_ref[b], wwt_ref[...],
                    preferred_element_type=jnp.float32)        # (H, Wout) f32
        y = jnp.dot(wh_ref[...], t,
                    preferred_element_type=jnp.float32)        # (Hout, Wout) f32
        o_ref[b] = y.astype(o_ref.dtype)
        return carry
    lax.fori_loop(0, x_ref.shape[0], body, 0)


# ---------------------------------------------------------------------------
# Module wrapper
# ---------------------------------------------------------------------------

class ResizeTransform:
    """Resize a 2-D vector field and rescale it (ndims == 2, bilinear,
    align_corners=True) -- matches the PyTorch module's forward pass."""

    # Use the single-matmul Kronecker path while the (padded) K weight stays
    # under this many bytes; larger planes use the separable fallback.
    _KRON_WEIGHT_LIMIT = 12 * 1024 * 1024

    def __init__(self, vel_resize: float, ndims: int):
        self.factor = 1.0 / vel_resize
        if ndims != 2:
            # TODO(synk): only the ndims==2 (bilinear) path is implemented; the
            # 'linear' / 'trilinear' modes would need 1-D / 3-D weight tensors.
            raise NotImplementedError("Pallas ResizeTransform implemented for ndims=2 only")

    def __call__(self, x: jnp.ndarray, *, force_separable: bool = False) -> jnp.ndarray:
        factor = self.factor
        if factor == 1.0:
            return x

        N, C, H, W = x.shape
        # Same rounding as torch (output size = floor(scale_factor * size)).
        # TODO(synk): torch's recompute_scale_factor rounding can differ by one
        # for some non-dyadic factors; verified for the dyadic factors used here.
        H_out = int(math.floor(H * factor))
        W_out = int(math.floor(W * factor))

        # torch: (scale then interp) for factor>1, (interp then scale) for
        # factor<1.  Linear interp => both equal factor * Wh @ x @ Ww^T, so the
        # factor is folded into the host-side weights.  Weights are kept f32
        # (bf16 inputs get promoted inside the matmul; no double rounding).
        Wh = _interp_matrix(H, H_out) * np.float32(factor)       # (Hout, H)
        Ww = _interp_matrix(W, W_out)                            # (Wout, W)

        NC = N * C
        itemsize = jnp.dtype(x.dtype).itemsize
        cap = _vmem_capacity_bytes()
        vmem_limit = (cap * 3) // 4               # above the default scoped limit
        budget = max(vmem_limit - (8 << 20), 8 << 20)   # headroom for compiler scratch

        kron_bytes = 2 * _round_up(H * W, 8) * _round_up(H_out * W_out, 128) * 4
        use_kron = (not force_separable) and kron_bytes <= min(
            self._KRON_WEIGHT_LIMIT, budget // 3)

        if use_kron:
            return self._run_kron(x, Wh, Ww, N, C, H_out, W_out,
                                  NC, itemsize, budget, vmem_limit)
        return self._run_separable(x, Wh, Ww, N, C, H, W, H_out, W_out,
                                   NC, itemsize, budget, vmem_limit)

    # -- Kron path: one lane-dense matmul per plane block ---------------------
    def _run_kron(self, x, Wh, Ww, N, C, H_out, W_out,
                  NC, itemsize, budget, vmem_limit):
        H, W = x.shape[2], x.shape[3]
        KI, KO = H * W, H_out * W_out
        # K[p*W+q, o*W_out+r] = factor * Wh[o,p] * Ww[r,q]
        K = jnp.asarray(np.kron(Wh, Ww).T)                 # (H*W, Hout*Wout) f32
        x_flat = x.reshape(NC, KI)                         # free reshape (contiguous NCHW)

        BC = _pick_bc_kron(NC, KI, KO, itemsize, budget)
        grid = (pl.cdiv(NC, BC),)

        flops = 2 * NC * KI * KO
        bytes_accessed = NC * (KI + KO) * itemsize + KI * KO * 4

        out = pl.pallas_call(
            _kron_resize_kernel,
            out_shape=jax.ShapeDtypeStruct((NC, KO), x.dtype),
            grid=grid,
            in_specs=[
                pl.BlockSpec((BC, KI), lambda g: (g, 0)),
                pl.BlockSpec((KI, KO), lambda g: (0, 0)),   # VMEM-resident weight
            ],
            out_specs=pl.BlockSpec((BC, KO), lambda g: (g, 0)),
            compiler_params=pltpu.CompilerParams(
                dimension_semantics=("parallel",),
                vmem_limit_bytes=int(vmem_limit)),
            cost_estimate=pl.CostEstimate(
                flops=int(flops), transcendentals=0,
                bytes_accessed=int(bytes_accessed)),
        )(x_flat, K)
        return out.reshape(N, C, H_out, W_out)

    # -- Separable fallback: width then height pass, per plane ----------------
    def _run_separable(self, x, Wh, Ww, N, C, H, W, H_out, W_out,
                       NC, itemsize, budget, vmem_limit):
        Wh_j = jnp.asarray(Wh)           # (Hout, H), factor folded
        WwT = jnp.asarray(Ww.T)          # (W, Wout)
        x_flat = x.reshape(NC, H, W)

        BC = _pick_bc_separable(NC, H, W, H_out, W_out, itemsize, budget)
        grid = (pl.cdiv(NC, BC),)

        flops = 2 * NC * (H * W * W_out + H_out * H * W_out)
        bytes_accessed = (NC * (H * W + H_out * W_out) * itemsize
                          + (H_out * H + W * W_out) * 4)

        out = pl.pallas_call(
            _separable_resize_kernel,
            out_shape=jax.ShapeDtypeStruct((NC, H_out, W_out), x.dtype),
            grid=grid,
            in_specs=[
                pl.BlockSpec((BC, H, W), lambda g: (g, 0, 0)),
                pl.BlockSpec((H_out, H), lambda g: (0, 0)),   # VMEM-resident weights
                pl.BlockSpec((W, W_out), lambda g: (0, 0)),
            ],
            out_specs=pl.BlockSpec((BC, H_out, W_out), lambda g: (g, 0, 0)),
            compiler_params=pltpu.CompilerParams(
                dimension_semantics=("parallel",),
                vmem_limit_bytes=int(vmem_limit)),
            cost_estimate=pl.CostEstimate(
                flops=int(flops), transcendentals=0,
                bytes_accessed=int(bytes_accessed)),
        )(x_flat, Wh_j, WwT)
        return out.reshape(N, C, H_out, W_out)


# ---------------------------------------------------------------------------
# Pure-JAX reference (same separable math) for a sanity check
# ---------------------------------------------------------------------------

def _reference(x, vel_resize):
    factor = 1.0 / vel_resize
    if factor == 1.0:
        return x
    N, C, H, W = x.shape
    H_out = int(math.floor(H * factor))
    W_out = int(math.floor(W * factor))
    Wh = jnp.asarray(_interp_matrix(H, H_out))
    Ww = jnp.asarray(_interp_matrix(W, W_out))
    if factor > 1:
        y = jnp.einsum('op,ncpq,rq->ncor', Wh, x * factor, Ww)
    else:
        y = jnp.einsum('op,ncpq,rq->ncor', Wh, x, Ww) * factor
    return y


if __name__ == "__main__":
    key = jax.random.PRNGKey(0)
    # 2-D flow field: batch=2, channels=2 (vector components), spatial=16x16.
    x = jax.random.normal(key, (2, 2, 16, 16), dtype=jnp.float32)

    # Upsampling: vel_resize=0.5 -> factor=2.0 (torch: scale then interpolate).
    up = ResizeTransform(vel_resize=0.5, ndims=2)
    y_up = up(x)
    jax.block_until_ready(y_up)
    assert y_up.shape == (2, 2, 32, 32), y_up.shape
    assert jnp.allclose(y_up, _reference(x, 0.5), atol=1e-4)

    # Downsampling: vel_resize=2.0 -> factor=0.5 (torch: interpolate then scale).
    down = ResizeTransform(vel_resize=2.0, ndims=2)
    y_down = down(x)
    jax.block_until_ready(y_down)
    assert y_down.shape == (2, 2, 8, 8), y_down.shape
    assert jnp.allclose(y_down, _reference(x, 2.0), atol=1e-4)

    # Exercise the large-plane separable fallback path as well (forced here at
    # a small size just for coverage).
    y_sep = up(x, force_separable=True)
    jax.block_until_ready(y_sep)
    assert y_sep.shape == (2, 2, 32, 32), y_sep.shape
    assert jnp.allclose(y_sep, y_up, atol=1e-4)

    print("KERNEL_OK")
</pallas_src>

<mosaic_0001>
module attributes {stable_mosaic.version = 11 : i64} {
  func.func @_kron_resize_kernel(%arg0: i32, %arg1: memref<4x256xf32, #tpu.memory_space<vmem>>, %arg2: memref<256x1024xf32, #tpu.memory_space<vmem>>, %arg3: memref<4x1024xf32, #tpu.memory_space<vmem>>) attributes {dimension_semantics = [#tpu.dimension_semantics<parallel>], iteration_bounds = array<i64: 1>, scalar_prefetch = 0 : i64, scratch_operands = 0 : i64, tpu.core_type = #tpu.core_type<tc>, window_params = [{transform_indices = @transform_0, window_bounds = array<i64: 4, 256>}, {pipeline_mode = #tpu.pipeline_mode<synchronous>, transform_indices = @transform_1, window_bounds = array<i64: 256, 1024>}, {transform_indices = @transform_2, window_bounds = array<i64: 4, 1024>}]} {
    %c0 = arith.constant 0 : index
    %c0_0 = arith.constant 0 : index
    %0 = vector.load %arg1[%c0, %c0_0] : memref<4x256xf32, #tpu.memory_space<vmem>>, vector<4x256xf32>
    %c0_1 = arith.constant 0 : index
    %c0_2 = arith.constant 0 : index
    %1 = vector.load %arg2[%c0_1, %c0_2] : memref<256x1024xf32, #tpu.memory_space<vmem>>, vector<256x1024xf32>
    %cst = arith.constant dense<0.000000e+00> : vector<4x1024xf32>
    %2 = tpu.matmul %0, %1, %cst {dimension_numbers = #tpu.dot_dimension_numbers<[1], [0], [0], [1], [0, 0, 1, 1], [], []>} : vector<4x256xf32>, vector<256x1024xf32>, vector<4x1024xf32> -> vector<4x1024xf32>
    %c0_3 = arith.constant 0 : index
    %c0_4 = arith.constant 0 : index
    %3 = vector.load %arg3[%c0_3, %c0_4] : memref<4x1024xf32, #tpu.memory_space<vmem>>, vector<4x1024xf32>
    tpu.vector_store %arg3[%c0_3, %c0_4], %2 {strides = array<i32>} : memref<4x1024xf32, #tpu.memory_space<vmem>>, vector<4x1024xf32>,
    return
  }
  func.func @transform_0(%arg0: i32) -> (i32, i32) {
    %c0_i32 = arith.constant 0 : i32
    %c0_i32_0 = arith.constant 0 : i32
    return %arg0, %c0_i32 : i32, i32
  }
  func.func @transform_1(%arg0: i32) -> (i32, i32) {
    %c0_i32 = arith.constant 0 : i32
    %c0_i32_0 = arith.constant 0 : i32
    %c0_i32_1 = arith.constant 0 : i32
    return %c0_i32, %c0_i32_0 : i32, i32
  }
  func.func @transform_2(%arg0: i32) -> (i32, i32) {
    %c0_i32 = arith.constant 0 : i32
    %c0_i32_0 = arith.constant 0 : i32
    return %arg0, %c0_i32 : i32, i32
  }
}

</mosaic_0001>

<llo_original>
// kernel: tpu_custom_call.1
$region0: #{tpu_custom_call.1}
  #allocation0 [shape = 'u32[]', space=smem, size = 0x4, offset = 0x4, fixed_abs, tag = 'smem constant byte address 0x4 - core index']
  #allocation1 [shape = 'u32[144,128]{1,0:T(1,128)}', space=vmem, size = 0x12000, scoped, tag = 'internal scratch']
  %s0 = inlined_call_operand.hbm [shape: f32[4,256], index: 0, kind: input, shape index: {}]
  %s1 = inlined_call_operand.hbm [shape: f32[256,1024], index: 1, kind: input, shape index: {}]
  %s2 = inlined_call_operand.hbm [shape: f32[4,1024], index: 2, kind: output, shape index: {}]
  %s3 = sld [smem:[#allocation0]]
  $region26: #{tpu_custom_call.1} parent=0
    _
  %s5 = ssub.s32 1, %s3
  %s6 = scalar_select 0, %s5, %s3
  $region1: #{tpu_custom_call.1} parent=0
    #allocation2 [shape = 'u8[4096]{0}', space=vmem, size = 0x1000, scoped, tag = 'input window, operand 0, single buffered']
    #allocation3 [shape = 's32[1]{0}', space=sflag, size = 0x4, scoped, tag = 'scoped memory for tpu_custom_call.1']
    #allocation4 [shape = 's32[1]{0}', space=sflag, size = 0x4, scoped, tag = 'scoped memory for tpu_custom_call.1']
    #allocation5 [shape = 'u8[1048576]{0}', space=vmem, size = 0x100000, scoped, tag = 'input window, operand 1, single buffered']
    #allocation6 [shape = 's32[1]{0}', space=sflag, size = 0x4, scoped, tag = 'scoped memory for tpu_custom_call.1']
    #allocation7 [shape = 'u8[16384]{0}', space=vmem, size = 0x4000, scoped, tag = 'output window, operand 0, single buffered']
    %7 = vsyncpa [#allocation3], 0
    %8 = vsyncpa [#allocation6], 0
    %9 = vsyncpa [#allocation4], 0
    // Predicated region
    $region2: #{tpu_custom_call.1} parent=1 // pred_check
      _
    $region3: #{tpu_custom_call.1} parent=1 // pred_check_branch
      %11 = sbr.rel (0) target = $region5
    $region4: #{tpu_custom_call.1} parent=1 // pred_region
      %s13 = ssub.s32 128, 128
      %14 = vsyncadd [#allocation3], %s13
      %s16 = sshll.u32 [#allocation2], 4
      %s17 = int_to_ptr.vmem [resolvable:$true] %s16
      %19 = dma.hbm_to_vmem [thread:$0]  %s0, 128, %s17, [#allocation3]
    $region5: #{tpu_custom_call.1} parent=1 // pred_fallthru
      _
    // Predicated region
    $region6: #{tpu_custom_call.1} parent=1 // pred_check
      _
    $region7: #{tpu_custom_call.1} parent=1 // pred_check_branch
      %21 = sbr.rel (0) target = $region9
    $region8: #{tpu_custom_call.1} parent=1 // pred_region
      %s23 = ssub.s32 32768, 32768
      %24 = vsyncadd [#allocation6], %s23
      %s25 = sshll.u32 [#allocation5], 4
      %s26 = int_to_ptr.vmem [resolvable:$true] %s25
      %31 = dma.hbm_to_vmem [thread:$0]  %s1, 32768, %s26, [#allocation6], 1024, 1024, 64
    $region9: #{tpu_custom_call.1} parent=1 // pred_fallthru
      _
    // Predicated region
    $region10: #{tpu_custom_call.1} parent=1 // pred_check
      _
    $region11: #{tpu_custom_call.1} parent=1 // pred_check_branch
      %33 = sbr.rel (0) target = $region13
    $region12: #{tpu_custom_call.1} parent=1 // pred_region
      %34 = dma.done [#allocation3], 128
    $region13: #{tpu_custom_call.1} parent=1 // pred_fallthru
      _
    // Predicated region
    $region14: #{tpu_custom_call.1} parent=1 // pred_check
      _
    $region15: #{tpu_custom_call.1} parent=1 // pred_check_branch
      %36 = sbr.rel (0) target = $region17
    $region16: #{tpu_custom_call.1} parent=1 // pred_region
      %37 = dma.done [#allocation6], 32768
    $region17: #{tpu_custom_call.1} parent=1 // pred_fallthru
      _
    %v38 = vld [vmem:[#allocation2] sm:$0xff]
    %v39 = vld [vmem:[#allocation5] sm:$0xff]
    %v40 = vld [vmem:[#allocation5 + $0x8] sm:$0xff]
    %v41 = vld [vmem:[#allocation5 + $0x10] sm:$0xff]
    %v42 = vld [vmem:[#allocation5 + $0x18] sm:$0xff]
    %v43 = vld [vmem:[#allocation5 + $0x20] sm:$0xff]
    %v44 = vld [vmem:[#allocation5 + $0x28] sm:$0xff]
    %v45 = vld [vmem:[#allocation5 + $0x30] sm:$0xff]
    %v46 = vld [vmem:[#allocation5 + $0x38] sm:$0xff]
    %v47 = vld [vmem:[#allocation5 + $0x40] sm:$0xff]
    %v48 = vld [vmem:[#allocation5 + $0x48] sm:$0xff]
    %v49 = vld [vmem:[#allocation5 + $0x50] sm:$0xff]
    %v50 = vld [vmem:[#allocation5 + $0x58] sm:$0xff]
    %v51 = vld [vmem:[#allocation5 + $0x60] sm:$0xff]
    %v52 = vld [vmem:[#allocation5 + $0x68] sm:$0xff]
    %v53 = vld [vmem:[#allocation5 + $0x70] sm:$0xff]
    %v54 = vld [vmem:[#allocation5 + $0x78] sm:$0xff]
    %v55 = vld [vmem:[#allocation5 + $0x80] sm:$0xff]
    %v56 = vld [vmem:[#allocation5 + $0x88] sm:$0xff]
    %v57 = vld [vmem:[#allocation5 + $0x90] sm:$0xff]
    %v58 = vld [vmem:[#allocation5 + $0x98] sm:$0xff]
    %v59 = vld [vmem:[#allocation5 + $0xa0] sm:$0xff]
    %v60 = vld [vmem:[#allocation5 + $0xa8] sm:$0xff]
    %v61 = vld [vmem:[#allocation5 + $0xb0] sm:$0xff]
    %v62 = vld [vmem:[#allocation5 + $0xb8] sm:$0xff]
    %v63 = vld [vmem:[#allocation5 + $0xc0] sm:$0xff]
    %v64 = vld [vmem:[#allocation5 + $0xc8] sm:$0xff]
    %v65 = vld [vmem:[#allocation5 + $0xd0] sm:$0xff]
    %v66 = vld [vmem:[#allocation5 + $0xd8] sm:$0xff]
    %v67 = vld [vmem:[#allocation5 + $0xe0] sm:$0xff]
    %v68 = vld [vmem:[#allocation5 + $0xe8] sm:$0xff]
    %v69 = vld [vmem:[#allocation5 + $0xf0] sm:$0xff]
    %v70 = vld [vmem:[#allocation5 + $0xf8] sm:$0xff]
    %v71 = vld [vmem:[#allocation5 + $0x100] sm:$0xff]
    %v72 = vld [vmem:[#allocation5 + $0x108] sm:$0xff]
    %v73 = vld [vmem:[#allocation5 + $0x110] sm:$0xff]
    %v74 = vld [vmem:[#allocation5 + $0x118] sm:$0xff]
    %v75 = vld [vmem:[#allocation5 + $0x120] sm:$0xff]
    %v76 = vld [vmem:[#allocation5 + $0x128] sm:$0xff]
    %v77 = vld [vmem:[#allocation5 + $0x130] sm:$0xff]
    %v78 = vld [vmem:[#allocation5 + $0x138] sm:$0xff]
    %v79 = vld [vmem:[#allocation5 + $0x140] sm:$0xff]
    %v80 = vld [vmem:[#allocation5 + $0x148] sm:$0xff]
    %v81 = vld [vmem:[#allocation5 + $0x150] sm:$0xff]
    %v82 = vld [vmem:[#allocation5 + $0x158] sm:$0xff]
    %v83 = vld [vmem:[#allocation5 + $0x160] sm:$0xff]
    %v84 = vld [vmem:[#allocation5 + $0x168] sm:$0xff]
    %v85 = vld [vmem:[#allocation5 + $0x170] sm:$0xff]
    %v86 = vld [vmem:[#allocation5 + $0x178] sm:$0xff]
    %v87 = vld [vmem:[#allocation5 + $0x180] sm:$0xff]
    %v88 = vld [vmem:[#allocation5 + $0x188] sm:$0xff]
    %v89 = vld [vmem:[#allocation5 + $0x190] sm:$0xff]
    %v90 = vld [vmem:[#allocation5 + $0x198] sm:$0xff]
    %v91 = vld [vmem:[#allocation5 + $0x1a0] sm:$0xff]
    %v92 = vld [vmem:[#allocation5 + $0x1a8] sm:$0xff]
    %v93 = vld [vmem:[#allocation5 + $0x1b0] sm:$0xff]
    %v94 = vld [vmem:[#allocation5 + $0x1b8] sm:$0xff]
    %v95 = vld [vmem:[#allocation5 + $0x1c0] sm:$0xff]
    %v96 = vld [vmem:[#allocation5 + $0x1c8] sm:$0xff]
    %v97 = vld [vmem:[#allocation5 + $0x1d0] sm:$0xff]
    %v98 = vld [vmem:[#allocation5 + $0x1d8] sm:$0xff]
    %v99 = vld [vmem:[#allocation5 + $0x1e0] sm:$0xff]
    %v100 = vld [vmem:[#allocation5 + $0x1e8] sm:$0xff]
    %v101 = vld [vmem:[#allocation5 + $0x1f0] sm:$0xff]
    %v102 = vld [vmem:[#allocation5 + $0x1f8] sm:$0xff]
    %v103 = vld [vmem:[#allocation5 + $0x200] sm:$0xff]
    %v104 = vld [vmem:[#allocation5 + $0x208] sm:$0xff]
    %v105 = vld [vmem:[#allocation5 + $0x210] sm:$0xff]
    %v106 = vld [vmem:[#allocation5 + $0x218] sm:$0xff]
    %v107 = vld [vmem:[#allocation5 + $0x220] sm:$0xff]
    %v108 = vld [vmem:[#allocation5 + $0x228] sm:$0xff]
    %v109 = vld [vmem:[#allocation5 + $0x230] sm:$0xff]
    %v110 = vld [vmem:[#allocation5 + $0x238] sm:$0xff]
    %v111 = vld [vmem:[#allocation5 + $0x240] sm:$0xff]
    %v112 = vld [vmem:[#allocation5 + $0x248] sm:$0xff]
    %v113 = vld [vmem:[#allocation5 + $0x250] sm:$0xff]
    %v114 = vld [vmem:[#allocation5 + $0x258] sm:$0xff]
    %v115 = vld [vmem:[#allocation5 + $0x260] sm:$0xff]
    %v116 = vld [vmem:[#allocation5 + $0x268] sm:$0xff]
    %v117 = vld [vmem:[#allocation5 + $0x270] sm:$0xff]
    %v118 = vld [vmem:[#allocation5 + $0x278] sm:$0xff]
    %v119 = vld [vmem:[#allocation5 + $0x280] sm:$0xff]
    %v120 = vld [vmem:[#allocation5 + $0x288] sm:$0xff]
    %v121 = vld [vmem:[#allocation5 + $0x290] sm:$0xff]
    %v122 = vld [vmem:[#allocation5 + $0x298] sm:$0xff]
    %v123 = vld [vmem:[#allocation5 + $0x2a0] sm:$0xff]
    %v124 = vld [vmem:[#allocation5 + $0x2a8] sm:$0xff]
    %v125 = vld [vmem:[#allocation5 + $0x2b0] sm:$0xff]
    %v126 = vld [vmem:[#allocation5 + $0x2b8] sm:$0xff]
    %v127 = vld [vmem:[#allocation5 + $0x2c0] sm:$0xff]
    %v128 = vld [vmem:[#allocation5 + $0x2c8] sm:$0xff]
    %v129 = vld [vmem:[#allocation5 + $0x2d0] sm:$0xff]
    %v130 = vld [vmem:[#allocation5 + $0x2d8] sm:$0xff]
    %v131 = vld [vmem:[#allocation5 + $0x2e0] sm:$0xff]
    %v132 = vld [vmem:[#allocation5 + $0x2e8] sm:$0xff]
    %v133 = vld [vmem:[#allocation5 + $0x2f0] sm:$0xff]
    %v134 = vld [vmem:[#allocation5 + $0x2f8] sm:$0xff]
    %v135 = vld [vmem:[#allocation5 + $0x300] sm:$0xff]
    %v136 = vld [vmem:[#allocation5 + $0x308] sm:$0xff]
    %v137 = vld [vmem:[#allocation5 + $0x310] sm:$0xff]
    %v138 = vld [vmem:[#allocation5 + $0x318] sm:$0xff]
    %v139 = vld [vmem:[#allocation5 + $0x320] sm:$0xff]
    %v140 = vld [vmem:[#allocation5 + $0x328] sm:$0xff]
    %v141 = vld [vmem:[#allocation5 + $0x330] sm:$0xff]
    %v142 = vld [vmem:[#allocation5 + $0x338] sm:$0xff]
    %v143 = vld [vmem:[#allocation5 + $0x340] sm:$0xff]
    %v144 = vld [vmem:[#allocation5 + $0x348] sm:$0xff]
    %v145 = vld [vmem:[#allocation5 + $0x350] sm:$0xff]
    %v146 = vld [vmem:[#allocation5 + $0x358] sm:$0xff]
    %v147 = vld [vmem:[#allocation5 + $0x360] sm:$0xff]
    %v148 = vld [vmem:[#allocation5 + $0x368] sm:$0xff]
    %v149 = vld [vmem:[#allocation5 + $0x370] sm:$0xff]
    %v150 = vld [vmem:[#allocation5 + $0x378] sm:$0xff]
    %v151 = vld [vmem:[#allocation5 + $0x380] sm:$0xff]
    %v152 = vld [vmem:[#allocation5 + $0x388] sm:$0xff]
    %v153 = vld [vmem:[#allocation5 + $0x390] sm:$0xff]
    %v154 = vld [vmem:[#allocation5 + $0x398] sm:$0xff]
    %v155 = vld [vmem:[#allocation5 + $0x3a0] sm:$0xff]
    %v156 = vld [vmem:[#allocation5 + $0x3a8] sm:$0xff]
    %v157 = vld [vmem:[#allocation5 + $0x3b0] sm:$0xff]
    %v158 = vld [vmem:[#allocation5 + $0x3b8] sm:$0xff]
    %v159 = vld [vmem:[#allocation5 + $0x3c0] sm:$0xff]
    %v160 = vld [vmem:[#allocation5 + $0x3c8] sm:$0xff]
    %v161 = vld [vmem:[#allocation5 + $0x3d0] sm:$0xff]
    %v162 = vld [vmem:[#allocation5 + $0x3d8] sm:$0xff]
    %v163 = vld [vmem:[#allocation5 + $0x3e0] sm:$0xff]
    %v164 = vld [vmem:[#allocation5 + $0x3e8] sm:$0xff]
    %v165 = vld [vmem:[#allocation5 + $0x3f0] sm:$0xff]
    %v166 = vld [vmem:[#allocation5 + $0x3f8] sm:$0xff]
    %v167 = vld [vmem:[#allocation5 + $0x400] sm:$0xff]
    %v168 = vld [vmem:[#allocation5 + $0x408] sm:$0xff]
    %v169 = vld [vmem:[#allocation5 + $0x410] sm:$0xff]
    %v170 = vld [vmem:[#allocation5 + $0x418] sm:$0xff]
    %v171 = vld [vmem:[#allocation5 + $0x420] sm:$0xff]
    %v172 = vld [vmem:[#allocation5 + $0x428] sm:$0xff]
    %v173 = vld [vmem:[#allocation5 + $0x430] sm:$0xff]
    %v174 = vld [vmem:[#allocation5 + $0x438] sm:$0xff]
    %v175 = vld [vmem:[#allocation5 + $0x440] sm:$0xff]
    %v176 = vld [vmem:[#allocation5 + $0x448] sm:$0xff]
    %v177 = vld [vmem:[#allocation5 + $0x450] sm:$0xff]
    %v178 = vld [vmem:[#allocation5 + $0x458] sm:$0xff]
    %v179 = vld [vmem:[#allocation5 + $0x460] sm:$0xff]
    %v180 = vld [vmem:[#allocation5 + $0x468] sm:$0xff]
    %v181 = vld [vmem:[#allocation5 + $0x470] sm:$0xff]
    %v182 = vld [vmem:[#allocation5 + $0x478] sm:$0xff]
    %v183 = vld [vmem:[#allocation5 + $0x480] sm:$0xff]
    %v184 = vld [vmem:[#allocation5 + $0x488] sm:$0xff]
    %v185 = vld [vmem:[#allocation5 + $0x490] sm:$0xff]
    %v186 = vld [vmem:[#allocation5 + $0x498] sm:$0xff]
    %v187 = vld [vmem:[#allocation5 + $0x4a0] sm:$0xff]
    %v188 = vld [vmem:[#allocation5 + $0x4a8] sm:$0xff]
    %v189 = vld [vmem:[#allocation5 + $0x4b0] sm:$0xff]
    %v190 = vld [vmem:[#allocation5 + $0x4b8] sm:$0xff]
    %v191 = vld [vmem:[#allocation5 + $0x4c0] sm:$0xff]
    %v192 = vld [vmem:[#allocation5 + $0x4c8] sm:$0xff]
    %v193 = vld [vmem:[#allocation5 + $0x4d0] sm:$0xff]
    %v194 = vld [vmem:[#allocation5 + $0x4d8] sm:$0xff]
    %v195 = vld [vmem:[#allocation5 + $0x4e0] sm:$0xff]
    %v196 = vld [vmem:[#allocation5 + $0x4e8] sm:$0xff]
    %v197 = vld [vmem:[#allocation5 + $0x4f0] sm:$0xff]
    %v198 = vld [vmem:[#allocation5 + $0x4f8] sm:$0xff]
    %v199 = vld [vmem:[#allocation5 + $0x500] sm:$0xff]
    %v200 = vld [vmem:[#allocation5 + $0x508] sm:$0xff]
    %v201 = vld [vmem:[#allocation5 + $0x510] sm:$0xff]
    %v202 = vld [vmem:[#allocation5 + $0x518] sm:$0xff]
    %v203 = vld [vmem:[#allocation5 + $0x520] sm:$0xff]
    %v204 = vld [vmem:[#allocation5 + $0x528] sm:$0xff]
    %v205 = vld [vmem:[#allocation5 + $0x530] sm:$0xff]
    %v206 = vld [vmem:[#allocation5 + $0x538] sm:$0xff]
    %v207 = vld [vmem:[#allocation5 + $0x540] sm:$0xff]
    %v208 = vld [vmem:[#allocation5 + $0x548] sm:$0xff]
    %v209 = vld [vmem:[#allocation5 + $0x550] sm:$0xff]
    %v210 = vld [vmem:[#allocation5 + $0x558] sm:$0xff]
    %v211 = vld [vmem:[#allocation5 + $0x560] sm:$0xff]
    %v212 = vld [vmem:[#allocation5 + $0x568] sm:$0xff]
    %v213 = vld [vmem:[#allocation5 + $0x570] sm:$0xff]
    %v214 = vld [vmem:[#allocation5 + $0x578] sm:$0xff]
    %v215 = vld [vmem:[#allocation5 + $0x580] sm:$0xff]
    %v216 = vld [vmem:[#allocation5 + $0x588] sm:$0xff]
    %v217 = vld [vmem:[#allocation5 + $0x590] sm:$0xff]
    %v218 = vld [vmem:[#allocation5 + $0x598] sm:$0xff]
    %v219 = vld [vmem:[#allocation5 + $0x5a0] sm:$0xff]
    %v220 = vld [vmem:[#allocation5 + $0x5a8] sm:$0xff]
    %v221 = vld [vmem:[#allocation5 + $0x5b0] sm:$0xff]
    %v222 = vld [vmem:[#allocation5 + $0x5b8] sm:$0xff]
    %v223 = vld [vmem:[#allocation5 + $0x5c0] sm:$0xff]
    %v224 = vld [vmem:[#allocation5 + $0x5c8] sm:$0xff]
    %v225 = vld [vmem:[#allocation5 + $0x5d0] sm:$0xff]
    %v226 = vld [vmem:[#allocation5 + $0x5d8] sm:$0xff]
    %v227 = vld [vmem:[#allocation5 + $0x5e0] sm:$0xff]
    %v228 = vld [vmem:[#allocation5 + $0x5e8] sm:$0xff]
    %v229 = vld [vmem:[#allocation5 + $0x5f0] sm:$0xff]
    %v230 = vld [vmem:[#allocation5 + $0x5f8] sm:$0xff]
    %v231 = vld [vmem:[#allocation5 + $0x600] sm:$0xff]
    %v232 = vld [vmem:[#allocation5 + $0x608] sm:$0xff]
    %v233 = vld [vmem:[#allocation5 + $0x610] sm:$0xff]
    %v234 = vld [vmem:[#allocation5 + $0x618] sm:$0xff]
    %v235 = vld [vmem:[#allocation5 + $0x620] sm:$0xff]
    %v236 = vld [vmem:[#allocation5 + $0x628] sm:$0xff]
    %v237 = vld [vmem:[#allocation5 + $0x630] sm:$0xff]
    %v238 = vld [vmem:[#allocation5 + $0x638] sm:$0xff]
    %v239 = vld [vmem:[#allocation5 + $0x640] sm:$0xff]
    %v240 = vld [vmem:[#allocation5 + $0x648] sm:$0xff]
    %v241 = vld [vmem:[#allocation5 + $0x650] sm:$0xff]
    %v242 = vld [vmem:[#allocation5 + $0x658] sm:$0xff]
    %v243 = vld [vmem:[#allocation5 + $0x660] sm:$0xff]
    %v244 = vld [vmem:[#allocation5 + $0x668] sm:$0xff]
    %v245 = vld [vmem:[#allocation5 + $0x670] sm:$0xff]
    %v246 = vld [vmem:[#allocation5 + $0x678] sm:$0xff]
    %v247 = vld [vmem:[#allocation5 + $0x680] sm:$0xff]
    %v248 = vld [vmem:[#allocation5 + $0x688] sm:$0xff]
    %v249 = vld [vmem:[#allocation5 + $0x690] sm:$0xff]
    %v250 = vld [vmem:[#allocation5 + $0x698] sm:$0xff]
    %v251 = vld [vmem:[#allocation5 + $0x6a0] sm:$0xff]
    %v252 = vld [vmem:[#allocation5 + $0x6a8] sm:$0xff]
    %v253 = vld [vmem:[#allocation5 + $0x6b0] sm:$0xff]
    %v254 = vld [vmem:[#allocation5 + $0x6b8] sm:$0xff]
    %v255 = vld [vmem:[#allocation5 + $0x6c0] sm:$0xff]
    %v256 = vld [vmem:[#allocation5 + $0x6c8] sm:$0xff]
    %v257 = vld [vmem:[#allocation5 + $0x6d0] sm:$0xff]
    %v258 = vld [vmem:[#allocation5 + $0x6d8] sm:$0xff]
    %v259 = vld [vmem:[#allocation5 + $0x6e0] sm:$0xff]
    %v260 = vld [vmem:[#allocation5 + $0x6e8] sm:$0xff]
    %v261 = vld [vmem:[#allocation5 + $0x6f0] sm:$0xff]
    %v262 = vld [vmem:[#allocation5 + $0x6f8] sm:$0xff]
    %v263 = vld [vmem:[#allocation5 + $0x700] sm:$0xff]
    %v264 = vld [vmem:[#allocation5 + $0x708] sm:$0xff]
    %v265 = vld [vmem:[#allocation5 + $0x710] sm:$0xff]
    %v266 = vld [vmem:[#allocation5 + $0x718] sm:$0xff]
    %v267 = vld [vmem:[#allocation5 + $0x720] sm:$0xff]
    %v268 = vld [vmem:[#allocation5 + $0x728] sm:$0xff]
    %v269 = vld [vmem:[#allocation5 + $0x730] sm:$0xff]
    %v270 = vld [vmem:[#allocation5 + $0x738] sm:$0xff]
    %v271 = vld [vmem:[#allocation5 + $0x740] sm:$0xff]
    %v272 = vld [vmem:[#allocation5 + $0x748] sm:$0xff]
    %v273 = vld [vmem:[#allocation5 + $0x750] sm:$0xff]
    %v274 = vld [vmem:[#allocation5 + $0x758] sm:$0xff]
    %v275 = vld [vmem:[#allocation5 + $0x760] sm:$0xff]
    %v276 = vld [vmem:[#allocation5 + $0x768] sm:$0xff]
    %v277 = vld [vmem:[#allocation5 + $0x770] sm:$0xff]
    %v278 = vld [vmem:[#allocation5 + $0x778] sm:$0xff]
    %v279 = vld [vmem:[#allocation5 + $0x780] sm:$0xff]
    %v280 = vld [vmem:[#allocation5 + $0x788] sm:$0xff]
    %v281 = vld [vmem:[#allocation5 + $0x790] sm:$0xff]
    %v282 = vld [vmem:[#allocation5 + $0x798] sm:$0xff]
    %v283 = vld [vmem:[#allocation5 + $0x7a0] sm:$0xff]
    %v284 = vld [vmem:[#allocation5 + $0x7a8] sm:$0xff]
    %v285 = vld [vmem:[#allocation5 + $0x7b0] sm:$0xff]
    %v286 = vld [vmem:[#allocation5 + $0x7b8] sm:$0xff]
    %v287 = vld [vmem:[#allocation5 + $0x7c0] sm:$0xff]
    %v288 = vld [vmem:[#allocation5 + $0x7c8] sm:$0xff]
    %v289 = vld [vmem:[#allocation5 + $0x7d0] sm:$0xff]
    %v290 = vld [vmem:[#allocation5 + $0x7d8] sm:$0xff]
    %v291 = vld [vmem:[#allocation5 + $0x7e0] sm:$0xff]
    %v292 = vld [vmem:[#allocation5 + $0x7e8] sm:$0xff]
    %v293 = vld [vmem:[#allocation5 + $0x7f0] sm:$0xff]
    %v294 = vld [vmem:[#allocation5 + $0x7f8] sm:$0xff]
    %v296 = vcombine.high %v38, %v38
    %298 = vmatprep.subr.mxu0 %v160
    %299 = vmatpush1.msra.mxu0 %v159
    %300 = vmatprep.subr.mxu0 %v152
    %301 = vmatpush1.msra.mxu0 %v151
    %302 = vmatprep.subr.mxu0 %v144
    %303 = vmatpush1.msra.mxu0 %v143
    %304 = vmatprep.subr.mxu0 %v136
    %305 = vmatpush1.msra.mxu0 %v135
    %306 = vmatprep.subr.mxu0 %v128
    %307 = vmatpush1.msra.mxu0 %v127
    %308 = vmatprep.subr.mxu0 %v120
    %309 = vmatpush1.msra.mxu0 %v119
    %310 = vmatprep.subr.mxu0 %v112
    %311 = vmatpush1.msra.mxu0 %v111
    %312 = vmatprep.subr.mxu0 %v104
    %313 = vmatpush1.msra.mxu0 %v103
    %314 = vmatprep.subr.mxu0 %v96
    %315 = vmatpush1.msra.mxu0 %v95
    %316 = vmatprep.subr.mxu0 %v88
    %317 = vmatpush1.msra.mxu0 %v87
    %318 = vmatprep.subr.mxu0 %v80
    %319 = vmatpush1.msra.mxu0 %v79
    %320 = vmatprep.subr.mxu0 %v72
    %321 = vmatpush1.msra.mxu0 %v71
    %322 = vmatprep.subr.mxu0 %v64
    %323 = vmatpush1.msra.mxu0 %v63
    %324 = vmatprep.subr.mxu0 %v56
    %325 = vmatpush1.msra.mxu0 %v55
    %326 = vmatprep.subr.mxu0 %v48
    %327 = vmatpush1.msra.mxu0 %v47
    %328 = vmatprep.subr.mxu0 %v40
    %329 = vmatpush1.msra.mxu0 %v39
    %330 = vmatprep.subr.mxu0 %v288
    %331 = vmatpush2.msra.mxu0 %v287
    %332 = vmatprep.subr.mxu0 %v280
    %333 = vmatpush2.msra.mxu0 %v279
    %334 = vmatprep.subr.mxu0 %v272
    %335 = vmatpush2.msra.mxu0 %v271
    %336 = vmatprep.subr.mxu0 %v264
    %337 = vmatpush2.msra.mxu0 %v263
    %338 = vmatprep.subr.mxu0 %v256
    %339 = vmatpush2.msra.mxu0 %v255
    %340 = vmatprep.subr.mxu0 %v248
    %341 = vmatpush2.msra.mxu0 %v247
    %342 = vmatprep.subr.mxu0 %v240
    %343 = vmatpush2.msra.mxu0 %v239
    %344 = vmatprep.subr.mxu0 %v232
    %345 = vmatpush2.msra.mxu0 %v231
    %346 = vmatprep.subr.mxu0 %v224
    %347 = vmatpush2.msra.mxu0 %v223
    %348 = vmatprep.subr.mxu0 %v216
    %349 = vmatpush2.msra.mxu0 %v215
    %350 = vmatprep.subr.mxu0 %v208
    %351 = vmatpush2.msra.mxu0 %v207
    %352 = vmatprep.subr.mxu0 %v200
    %353 = vmatpush2.msra.mxu0 %v199
    %354 = vmatprep.subr.mxu0 %v192
    %355 = vmatpush2.msra.mxu0 %v191
    %356 = vmatprep.subr.mxu0 %v184
    %357 = vmatpush2.msra.mxu0 %v183
    %358 = vmatprep.subr.mxu0 %v176
    %359 = vmatpush2.msra.mxu0 %v175
    %360 = vmatprep.subr.mxu0 %v168
    %361 = vmatpush2.msra.mxu0 %v167
    %362 = vmatprep.mubr.f32.mxu0 %v296
    %363 = vmatmul.mubr.f32.gmra.mxu0 %v38
    %v364 = vpop.f32.mrf.mxu0
    %v365 = vadd.f32 0.0, %v364
    %v366 = vpop.f32.mrf.mxu0
    %v367 = vadd.f32 0.0, %v366
    %368 = vdwg.mxu0
    %369 = vmatprep.subr.mxu0 %v162
    %370 = vmatpush1.msra.mxu0 %v161
    %371 = vmatprep.subr.mxu0 %v154
    %372 = vmatpush1.msra.mxu0 %v153
    %373 = vmatprep.subr.mxu0 %v146
    %374 = vmatpush1.msra.mxu0 %v145
    %375 = vmatprep.subr.mxu0 %v138
    %376 = vmatpush1.msra.mxu0 %v137
    %377 = vmatprep.subr.mxu0 %v130
    %378 = vmatpush1.msra.mxu0 %v129
    %379 = vmatprep.subr.mxu0 %v122
    %380 = vmatpush1.msra.mxu0 %v121
    %381 = vmatprep.subr.mxu0 %v114
    %382 = vmatpush1.msra.mxu0 %v113
    %383 = vmatprep.subr.mxu0 %v106
    %384 = vmatpush1.msra.mxu0 %v105
    %385 = vmatprep.subr.mxu0 %v98
    %386 = vmatpush1.msra.mxu0 %v97
    %387 = vmatprep.subr.mxu0 %v90
    %388 = vmatpush1.msra.mxu0 %v89
    %389 = vmatprep.subr.mxu0 %v82
    %390 = vmatpush1.msra.mxu0 %v81
    %391 = vmatprep.subr.mxu0 %v74
    %392 = vmatpush1.msra.mxu0 %v73
    %393 = vmatprep.subr.mxu0 %v66
    %394 = vmatpush1.msra.mxu0 %v65
    %395 = vmatprep.subr.mxu0 %v58
    %396 = vmatpush1.msra.mxu0 %v57
    %397 = vmatprep.subr.mxu0 %v50
    %398 = vmatpush1.msra.mxu0 %v49
    %399 = vmatprep.subr.mxu0 %v42
    %400 = vmatpush1.msra.mxu0 %v41
    %401 = vmatprep.subr.mxu0 %v290
    %402 = vmatpush2.msra.mxu0 %v289
    %403 = vmatprep.subr.mxu0 %v282
    %404 = vmatpush2.msra.mxu0 %v281
    %405 = vmatprep.subr.mxu0 %v274
    %406 = vmatpush2.msra.mxu0 %v273
    %407 = vmatprep.subr.mxu0 %v266
    %408 = vmatpush2.msra.mxu0 %v265
    %409 = vmatprep.subr.mxu0 %v258
    %410 = vmatpush2.msra.mxu0 %v257
    %411 = vmatprep.subr.mxu0 %v250
    %412 = vmatpush2.msra.mxu0 %v249
    %413 = vmatprep.subr.mxu0 %v242
    %414 = vmatpush2.msra.mxu0 %v241
    %415 = vmatprep.subr.mxu0 %v234
    %416 = vmatpush2.msra.mxu0 %v233
    %417 = vmatprep.subr.mxu0 %v226
    %418 = vmatpush2.msra.mxu0 %v225
    %419 = vmatprep.subr.mxu0 %v218
    %420 = vmatpush2.msra.mxu0 %v217
    %421 = vmatprep.subr.mxu0 %v210
    %422 = vmatpush2.msra.mxu0 %v209
    %423 = vmatprep.subr.mxu0 %v202
    %424 = vmatpush2.msra.mxu0 %v201
    %425 = vmatprep.subr.mxu0 %v194
    %426 = vmatpush2.msra.mxu0 %v193
    %427 = vmatprep.subr.mxu0 %v186
    %428 = vmatpush2.msra.mxu0 %v185
    %429 = vmatprep.subr.mxu0 %v178
    %430 = vmatpush2.msra.mxu0 %v177
    %431 = vmatprep.subr.mxu0 %v170
    %432 = vmatpush2.msra.mxu0 %v169
    %433 = vmatprep.mubr.f32.mxu0 %v296
    %434 = vmatmul.mubr.f32.gmra.mxu0 %v38
    %v435 = vpop.f32.mrf.mxu0
    %v436 = vadd.f32 0.0, %v435
    %v437 = vpop.f32.mrf.mxu0
    %v438 = vadd.f32 0.0, %v437
    %439 = vdwg.mxu0
    %440 = vmatprep.subr.mxu0 %v164
    %441 = vmatpush1.msra.mxu0 %v163
    %442 = vmatprep.subr.mxu0 %v156
    %443 = vmatpush1.msra.mxu0 %v155
    %444 = vmatprep.subr.mxu0 %v148
    %445 = vmatpush1.msra.mxu0 %v147
    %446 = vmatprep.subr.mxu0 %v140
    %447 = vmatpush1.msra.mxu0 %v139
    %448 = vmatprep.subr.mxu0 %v132
    %449 = vmatpush1.msra.mxu0 %v131
    %450 = vmatprep.subr.mxu0 %v124
    %451 = vmatpush1.msra.mxu0 %v123
    %452 = vmatprep.subr.mxu0 %v116
    %453 = vmatpush1.msra.mxu0 %v115
    %454 = vmatprep.subr.mxu0 %v108
    %455 = vmatpush1.msra.mxu0 %v107
    %456 = vmatprep.subr.mxu0 %v100
    %457 = vmatpush1.msra.mxu0 %v99
    %458 = vmatprep.subr.mxu0 %v92
    %459 = vmatpush1.msra.mxu0 %v91
    %460 = vmatprep.subr.mxu0 %v84
    %461 = vmatpush1.msra.mxu0 %v83
    %462 = vmatprep.subr.mxu0 %v76
    %463 = vmatpush1.msra.mxu0 %v75
    %464 = vmatprep.subr.mxu0 %v68
    %465 = vmatpush1.msra.mxu0 %v67
    %466 = vmatprep.subr.mxu0 %v60
    %467 = vmatpush1.msra.mxu0 %v59
    %468 = vmatprep.subr.mxu0 %v52
    %469 = vmatpush1.msra.mxu0 %v51
    %470 = vmatprep.subr.mxu0 %v44
    %471 = vmatpush1.msra.mxu0 %v43
    %472 = vmatprep.subr.mxu0 %v292
    %473 = vmatpush2.msra.mxu0 %v291
    %474 = vmatprep.subr.mxu0 %v284
    %475 = vmatpush2.msra.mxu0 %v283
    %476 = vmatprep.subr.mxu0 %v276
    %477 = vmatpush2.msra.mxu0 %v275
    %478 = vmatprep.subr.mxu0 %v268
    %479 = vmatpush2.msra.mxu0 %v267
    %480 = vmatprep.subr.mxu0 %v260
    %481 = vmatpush2.msra.mxu0 %v259
    %482 = vmatprep.subr.mxu0 %v252
    %483 = vmatpush2.msra.mxu0 %v251
    %484 = vmatprep.subr.mxu0 %v244
    %485 = vmatpush2.msra.mxu0 %v243
    %486 = vmatprep.subr.mxu0 %v236
    %487 = vmatpush2.msra.mxu0 %v235
    %488 = vmatprep.subr.mxu0 %v228
    %489 = vmatpush2.msra.mxu0 %v227
    %490 = vmatprep.subr.mxu0 %v220
    %491 = vmatpush2.msra.mxu0 %v219
    %492 = vmatprep.subr.mxu0 %v212
    %493 = vmatpush2.msra.mxu0 %v211
    %494 = vmatprep.subr.mxu0 %v204
    %495 = vmatpush2.msra.mxu0 %v203
    %496 = vmatprep.subr.mxu0 %v196
    %497 = vmatpush2.msra.mxu0 %v195
    %498 = vmatprep.subr.mxu0 %v188
    %499 = vmatpush2.msra.mxu0 %v187
    %500 = vmatprep.subr.mxu0 %v180
    %501 = vmatpush2.msra.mxu0 %v179
    %502 = vmatprep.subr.mxu0 %v172
    %503 = vmatpush2.msra.mxu0 %v171
    %504 = vmatprep.mubr.f32.mxu0 %v296
    %505 = vmatmul.mubr.f32.gmra.mxu0 %v38
    %v506 = vpop.f32.mrf.mxu0
    %v507 = vadd.f32 0.0, %v506
    %v508 = vpop.f32.mrf.mxu0
    %v509 = vadd.f32 0.0, %v508
    %510 = vdwg.mxu0
    %511 = vmatprep.subr.mxu0 %v166
    %512 = vmatpush1.msra.mxu0 %v165
    %513 = vmatprep.subr.mxu0 %v158
    %514 = vmatpush1.msra.mxu0 %v157
    %515 = vmatprep.subr.mxu0 %v150
    %516 = vmatpush1.msra.mxu0 %v149
    %517 = vmatprep.subr.mxu0 %v142
    %518 = vmatpush1.msra.mxu0 %v141
    %519 = vmatprep.subr.mxu0 %v134
    %520 = vmatpush1.msra.mxu0 %v133
    %521 = vmatprep.subr.mxu0 %v126
    %522 = vmatpush1.msra.mxu0 %v125
    %523 = vmatprep.subr.mxu0 %v118
    %524 = vmatpush1.msra.mxu0 %v117
    %525 = vmatprep.subr.mxu0 %v110
    %526 = vmatpush1.msra.mxu0 %v109
    %527 = vmatprep.subr.mxu0 %v102
    %528 = vmatpush1.msra.mxu0 %v101
    %529 = vmatprep.subr.mxu0 %v94
    %530 = vmatpush1.msra.mxu0 %v93
    %531 = vmatprep.subr.mxu0 %v86
    %532 = vmatpush1.msra.mxu0 %v85
    %533 = vmatprep.subr.mxu0 %v78
    %534 = vmatpush1.msra.mxu0 %v77
    %535 = vmatprep.subr.mxu0 %v70
    %536 = vmatpush1.msra.mxu0 %v69
    %537 = vmatprep.subr.mxu0 %v62
    %538 = vmatpush1.msra.mxu0 %v61
    %539 = vmatprep.subr.mxu0 %v54
    %540 = vmatpush1.msra.mxu0 %v53
    %541 = vmatprep.subr.mxu0 %v46
    %542 = vmatpush1.msra.mxu0 %v45
    %543 = vmatprep.subr.mxu0 %v294
    %544 = vmatpush2.msra.mxu0 %v293
    %545 = vmatprep.subr.mxu0 %v286
    %546 = vmatpush2.msra.mxu0 %v285
    %547 = vmatprep.subr.mxu0 %v278
    %548 = vmatpush2.msra.mxu0 %v277
    %549 = vmatprep.subr.mxu0 %v270
    %550 = vmatpush2.msra.mxu0 %v269
    %551 = vmatprep.subr.mxu0 %v262
    %552 = vmatpush2.msra.mxu0 %v261
    %553 = vmatprep.subr.mxu0 %v254
    %554 = vmatpush2.msra.mxu0 %v253
    %555 = vmatprep.subr.mxu0 %v246
    %556 = vmatpush2.msra.mxu0 %v245
    %557 = vmatprep.subr.mxu0 %v238
    %558 = vmatpush2.msra.mxu0 %v237
    %559 = vmatprep.subr.mxu0 %v230
    %560 = vmatpush2.msra.mxu0 %v229
    %561 = vmatprep.subr.mxu0 %v222
    %562 = vmatpush2.msra.mxu0 %v221
    %563 = vmatprep.subr.mxu0 %v214
    %564 = vmatpush2.msra.mxu0 %v213
    %565 = vmatprep.subr.mxu0 %v206
    %566 = vmatpush2.msra.mxu0 %v205
    %567 = vmatprep.subr.mxu0 %v198
    %568 = vmatpush2.msra.mxu0 %v197
    %569 = vmatprep.subr.mxu0 %v190
    %570 = vmatpush2.msra.mxu0 %v189
    %571 = vmatprep.subr.mxu0 %v182
    %572 = vmatpush2.msra.mxu0 %v181
    %573 = vmatprep.subr.mxu0 %v174
    %574 = vmatpush2.msra.mxu0 %v173
    %575 = vmatprep.mubr.f32.mxu0 %v296
    %576 = vmatmul.mubr.f32.gmra.mxu0 %v38
    %v577 = vpop.f32.mrf.mxu0
    %v578 = vadd.f32 0.0, %v577
    %v579 = vpop.f32.mrf.mxu0
    %v580 = vadd.f32 0.0, %v579
    %581 = vdwg.mxu0
    %v590 = vcombine.low %v365, %v367
    %v591 = vcombine.low %v436, %v438
    %v592 = vcombine.low %v507, %v509
    %v593 = vcombine.low %v578, %v580
    %598 = vst [vmem:[#allocation7] sm:$0xff] %v590
    %599 = vst [vmem:[#allocation7 + $0x8] sm:$0xff] %v591
    %600 = vst [vmem:[#allocation7 + $0x10] sm:$0xff] %v592
    %601 = vst [vmem:[#allocation7 + $0x18] sm:$0xff] %v593
    // Predicated region
    $region18: #{tpu_custom_call.1} parent=1 // pred_check
      _
    $region19: #{tpu_custom_call.1} parent=1 // pred_check_branch
      %603 = sbr.rel (0) target = $region21
    $region20: #{tpu_custom_call.1} parent=1 // pred_region
      %s605 = ssub.s32 512, 512
      %606 = vsyncadd [#allocation4], %s605
      %s608 = sshll.u32 [#allocation7], 4
      %s609 = int_to_ptr.vmem [resolvable:$true] %s608
      %611 = dma.vmem_to_hbm [thread:$0]  %s609, 512, %s2, [#allocation4]
    $region21: #{tpu_custom_call.1} parent=1 // pred_fallthru
      _
    // Predicated region
    $region22: #{tpu_custom_call.1} parent=1 // pred_check
      _
    $region23: #{tpu_custom_call.1} parent=1 // pred_check_branch
      %613 = sbr.rel (0) target = $region25
    $region24: #{tpu_custom_call.1} parent=1 // pred_region
      %614 = dma.done [#allocation4], 512
    $region25: #{tpu_custom_call.1} parent=1 // pred_fallthru
      _
    %615 = vsyncpa [#allocation3], 1
    %616 = vsyncpa [#allocation6], 1
    %617 = vsyncpa [#allocation4], 1

</llo_original>
